<compile_context>
chip_gen: v7x
topology: tpu7x:2x2x1
jax: 0.10.0
libtpu: 0.0.40
codegen_flags: <defaults>
</compile_context>

<pallas_src>
import jax
import jax.numpy as jnp
from jax import lax
from jax.experimental import pallas as pl
from jax.experimental.pallas import tpu as pltpu

HIDDEN = 128
IN_FEATS = 4
HEAD_ROW = 8                      # sublane-aligned start row of fused head weights
SLAB_ROWS = HEAD_ROW + HIDDEN     # 136 rows total (divisible by 8)

# packed slab layout (rows x 128 lanes, f32):
#   rows 0:4    w1        (4,128)
#   row  4      b1        (1,128)
#   row  5      b_head    (1,128)  [bpi in lanes 0:2, bv in lane 2, zeros elsewhere]
#   rows 8:136  w_head    (128,128)[wpi in lanes 0:2, wv in lane 2, zeros elsewhere]


def actor_critic_kernel(x_ref, p_ref, out_ref):
    x = x_ref[...]                                  # (B, 4)
    B = x.shape[0]

    # ---- fc1 + ReLU on the VPU: 4 broadcast multiply-adds (K=4, MXU not worth it here).
    h = x[:, 0:1] * p_ref[0:1, :]
    h = h + x[:, 1:2] * p_ref[1:2, :]
    h = h + x[:, 2:3] * p_ref[2:3, :]
    h = h + x[:, 3:4] * p_ref[3:4, :]
    h = jnp.maximum(h + p_ref[4:5, :], 0.0)         # + b1, ReLU -> (B, 128)

    # ---- fused head matmul on the MXU: one (B,128) x (128,128) -> (B,128).
    w_head = p_ref[HEAD_ROW:HEAD_ROW + HIDDEN, :]   # (128, 128)
    logits = jnp.dot(h, w_head, preferred_element_type=jnp.float32)
    logits = logits + p_ref[5:6, :]                 # + fused head bias

    # ---- softmax over dim=0 (batch axis), per column — matches F.softmax(pol, dim=0).
    # Columns are independent, so applying it across all 128 lanes is harmless;
    # the v column (lane 2) is restored from the raw logits below.
    m = jnp.max(logits, axis=0, keepdims=True)      # (1, 128)
    e = jnp.exp(logits - m)
    s = jnp.sum(e, axis=0, keepdims=True)           # (1, 128)
    # EUP approx reciprocal + one Newton-Raphson step (relative error ~2^-24):
    r = pl.reciprocal(s, approx=True)
    r = r * (2.0 - s * r)
    sm = e * r

    col = lax.broadcasted_iota(jnp.int32, (B, HIDDEN), 1)
    # lanes 0:1 -> softmaxed policy, lane 2 -> raw value, lanes >=3 -> padding (ignored)
    out_ref[...] = jnp.where(col < 2, sm, logits)


def pack_params(p):
    """Pack all weights/biases into one (136,128) f32 slab.

    Call this ONCE per parameter update (e.g. after each optimizer step), not
    per forward call; pass the resulting slab to actor_critic_apply.
    """
    slab = jnp.zeros((SLAB_ROWS, HIDDEN), jnp.float32)
    slab = slab.at[0:IN_FEATS, :].set(p["w1"])                    # (4,128)
    slab = slab.at[IN_FEATS, :].set(p["b1"][0])                   # b1
    slab = slab.at[5, 0:2].set(p["bpi"][0])                       # bpi
    slab = slab.at[5, 2].set(p["bv"][0, 0])                       # bv
    slab = slab.at[HEAD_ROW:HEAD_ROW + HIDDEN, 0:2].set(p["wpi"])  # (128,2)
    slab = slab.at[HEAD_ROW:HEAD_ROW + HIDDEN, 2:3].set(p["wv"])   # (128,1)
    return slab


@jax.jit
def actor_critic_apply(x, slab):
    """x: (B, 4) f32, slab: (136, 128) f32 packed params.

    Returns (pi (B,2) softmaxed over dim 0, v (B,1)). Jitted so the output
    slices fuse into consumers instead of launching extra tiny ops.
    """
    B = x.shape[0]
    vmem = pl.BlockSpec(memory_space=pltpu.MemorySpace.VMEM)
    out = pl.pallas_call(
        actor_critic_kernel,
        out_shape=jax.ShapeDtypeStruct((B, HIDDEN), jnp.float32),  # lane-dense output
        in_specs=[vmem, vmem],
        out_specs=vmem,
    )(x, slab)
    # Padded lanes (>=3) are garbage by construction; slice them away here (fused under jit).
    return out[:, 0:2], out[:, 2:3]


def actor_critic_forward(x, params):
    """Convenience wrapper for one-off calls; hot loops should pack once and
    call actor_critic_apply(x, slab) directly."""
    return actor_critic_apply(x, pack_params(params))


def init_params(key):
    """Deterministic synthetic init (shapes from the nn.Module __init__)."""
    k1, k2, k3, k4, k5, k6 = jax.random.split(key, 6)
    # Weights stored (in_features, out_features); biases (1, out_features).
    w1 = jax.random.normal(k1, (4, 128), jnp.float32) * 0.1
    b1 = jax.random.normal(k2, (1, 128), jnp.float32) * 0.01
    wpi = jax.random.normal(k3, (128, 2), jnp.float32) * 0.1
    bpi = jax.random.normal(k4, (1, 2), jnp.float32) * 0.01
    wv = jax.random.normal(k5, (128, 1), jnp.float32) * 0.1
    bv = jax.random.normal(k6, (1, 1), jnp.float32) * 0.01
    return dict(w1=w1, b1=b1, wpi=wpi, bpi=bpi, wv=wv, bv=bv)


def reference_forward(x, p):
    h = jnp.maximum(x @ p["w1"] + p["b1"], 0.0)
    pol = h @ p["wpi"] + p["bpi"]
    pi = jax.nn.softmax(pol, axis=0)   # dim=0, as in the PyTorch module
    v = h @ p["wv"] + p["bv"]
    return pi, v


if __name__ == "__main__":
    key = jax.random.PRNGKey(0)
    kx, kp = jax.random.split(key)

    B = 8
    x = jax.random.normal(kx, (B, 4), jnp.float32)
    params = init_params(kp)

    # Pack once (per param update), outside the per-step path.
    slab = jax.block_until_ready(pack_params(params))

    # Jitted apply; call twice so the second call exercises the cached executable.
    pi, v = actor_critic_apply(x, slab)
    pi = jax.block_until_ready(pi)
    v = jax.block_until_ready(v)
    pi, v = actor_critic_apply(x, slab)
    pi = jax.block_until_ready(pi)
    v = jax.block_until_ready(v)

    # correctness check against a plain-JAX reference
    pi_ref, v_ref = reference_forward(x, params)
    assert pi.shape == (B, 2) and v.shape == (B, 1)
    assert jnp.allclose(pi, pi_ref, atol=1e-5, rtol=1e-5)
    assert jnp.allclose(v, v_ref, atol=1e-5, rtol=1e-5)
    # softmax over dim=0: each of the 2 policy columns sums to 1
    assert jnp.allclose(jnp.sum(pi, axis=0), jnp.ones((2,)), atol=1e-5)

    print("KERNEL_OK")
</pallas_src>

<mosaic_0001>
module attributes {stable_mosaic.version = 11 : i64} {
  func.func @actor_critic_kernel(%arg0: memref<8x4xf32, #tpu.memory_space<vmem>>, %arg1: memref<136x128xf32, #tpu.memory_space<vmem>>, %arg2: memref<8x128xf32, #tpu.memory_space<vmem>>) attributes {dimension_semantics = [], scalar_prefetch = 0 : i64, scratch_operands = 0 : i64, tpu.core_type = #tpu.core_type<tc>} {
    %c0 = arith.constant 0 : index
    %c0_0 = arith.constant 0 : index
    %0 = vector.load %arg0[%c0, %c0_0] : memref<8x4xf32, #tpu.memory_space<vmem>>, vector<8x4xf32>
    %1 = vector.extract_strided_slice %0 {offsets = [0, 0], sizes = [8, 1], strides = [1, 1]} : vector<8x4xf32> to vector<8x1xf32>
    %c0_1 = arith.constant 0 : index
    %c0_2 = arith.constant 0 : index
    %2 = vector.load %arg1[%c0_1, %c0_2] : memref<136x128xf32, #tpu.memory_space<vmem>>, vector<1x128xf32>
    %3 = vector.broadcast %1 : vector<8x1xf32> to vector<8x128xf32>
    %4 = vector.broadcast %2 : vector<1x128xf32> to vector<8x128xf32>
    %5 = arith.mulf %3, %4 : vector<8x128xf32>
    %6 = vector.extract_strided_slice %0 {offsets = [0, 1], sizes = [8, 1], strides = [1, 1]} : vector<8x4xf32> to vector<8x1xf32>
    %c1 = arith.constant 1 : index
    %c0_3 = arith.constant 0 : index
    %7 = vector.load %arg1[%c1, %c0_3] : memref<136x128xf32, #tpu.memory_space<vmem>>, vector<1x128xf32>
    %8 = vector.broadcast %6 : vector<8x1xf32> to vector<8x128xf32>
    %9 = vector.broadcast %7 : vector<1x128xf32> to vector<8x128xf32>
    %10 = arith.mulf %8, %9 : vector<8x128xf32>
    %11 = arith.addf %5, %10 : vector<8x128xf32>
    %12 = vector.extract_strided_slice %0 {offsets = [0, 2], sizes = [8, 1], strides = [1, 1]} : vector<8x4xf32> to vector<8x1xf32>
    %c2 = arith.constant 2 : index
    %c0_4 = arith.constant 0 : index
    %13 = vector.load %arg1[%c2, %c0_4] : memref<136x128xf32, #tpu.memory_space<vmem>>, vector<1x128xf32>
    %14 = vector.broadcast %12 : vector<8x1xf32> to vector<8x128xf32>
    %15 = vector.broadcast %13 : vector<1x128xf32> to vector<8x128xf32>
    %16 = arith.mulf %14, %15 : vector<8x128xf32>
    %17 = arith.addf %11, %16 : vector<8x128xf32>
    %18 = vector.extract_strided_slice %0 {offsets = [0, 3], sizes = [8, 1], strides = [1, 1]} : vector<8x4xf32> to vector<8x1xf32>
    %c3 = arith.constant 3 : index
    %c0_5 = arith.constant 0 : index
    %19 = vector.load %arg1[%c3, %c0_5] : memref<136x128xf32, #tpu.memory_space<vmem>>, vector<1x128xf32>
    %20 = vector.broadcast %18 : vector<8x1xf32> to vector<8x128xf32>
    %21 = vector.broadcast %19 : vector<1x128xf32> to vector<8x128xf32>
    %22 = arith.mulf %20, %21 : vector<8x128xf32>
    %23 = arith.addf %17, %22 : vector<8x128xf32>
    %c4 = arith.constant 4 : index
    %c0_6 = arith.constant 0 : index
    %24 = vector.load %arg1[%c4, %c0_6] : memref<136x128xf32, #tpu.memory_space<vmem>>, vector<1x128xf32>
    %25 = vector.broadcast %24 : vector<1x128xf32> to vector<8x128xf32>
    %26 = arith.addf %23, %25 : vector<8x128xf32>
    %cst = arith.constant 0.000000e+00 : f32
    %27 = vector.broadcast %cst : f32 to vector<8x128xf32>
    %28 = arith.maximumf %26, %27 : vector<8x128xf32>
    %c8 = arith.constant 8 : index
    %c0_7 = arith.constant 0 : index
    %29 = vector.load %arg1[%c8, %c0_7] : memref<136x128xf32, #tpu.memory_space<vmem>>, vector<128x128xf32>
    %cst_8 = arith.constant dense<0.000000e+00> : vector<8x128xf32>
    %30 = tpu.matmul %28, %29, %cst_8 {dimension_numbers = #tpu.dot_dimension_numbers<[1], [0], [0], [1], [0, 0, 1, 1], [], []>} : vector<8x128xf32>, vector<128x128xf32>, vector<8x128xf32> -> vector<8x128xf32>
    %c5 = arith.constant 5 : index
    %c0_9 = arith.constant 0 : index
    %31 = vector.load %arg1[%c5, %c0_9] : memref<136x128xf32, #tpu.memory_space<vmem>>, vector<1x128xf32>
    %32 = vector.broadcast %31 : vector<1x128xf32> to vector<8x128xf32>
    %33 = arith.addf %30, %32 : vector<8x128xf32>
    %cst_10 = arith.constant dense<0xFF800000> : vector<128xf32>
    %34 = vector.multi_reduction <maximumf>, %33, %cst_10 [0] : vector<8x128xf32> to vector<128xf32>
    %35 = vector.shape_cast %34 : vector<128xf32> to vector<1x128xf32>
    %36 = vector.broadcast %35 : vector<1x128xf32> to vector<8x128xf32>
    %37 = arith.subf %33, %36 : vector<8x128xf32>
    %38 = math.exp %37 : vector<8x128xf32>
    %cst_11 = arith.constant dense<0.000000e+00> : vector<128xf32>
    %39 = vector.multi_reduction <add>, %38, %cst_11 [0] : vector<8x128xf32> to vector<128xf32>
    %40 = vector.shape_cast %39 : vector<128xf32> to vector<1x128xf32>
    %41 = tpu.reciprocal %40 {approx = true} : vector<1x128xf32> -> vector<1x128xf32>
    %42 = arith.mulf %40, %41 : vector<1x128xf32>
    %cst_12 = arith.constant 2.000000e+00 : f32
    %43 = vector.broadcast %cst_12 : f32 to vector<1x128xf32>
    %44 = arith.subf %43, %42 : vector<1x128xf32>
    %45 = arith.mulf %41, %44 : vector<1x128xf32>
    %46 = vector.broadcast %45 : vector<1x128xf32> to vector<8x128xf32>
    %47 = arith.mulf %38, %46 : vector<8x128xf32>
    %48 = tpu.iota {dimensions = array<i32: 1>} : vector<8x128xi32>
    %c2_i32 = arith.constant 2 : i32
    %49 = vector.broadcast %c2_i32 : i32 to vector<8x128xi32>
    %50 = arith.cmpi slt, %48, %49 : vector<8x128xi32>
    %51 = arith.select %50, %47, %33 : vector<8x128xi1>, vector<8x128xf32>
    %c0_13 = arith.constant 0 : index
    %c0_14 = arith.constant 0 : index
    %52 = vector.load %arg2[%c0_13, %c0_14] : memref<8x128xf32, #tpu.memory_space<vmem>>, vector<8x128xf32>
    tpu.vector_store %arg2[%c0_13, %c0_14], %51 {strides = array<i32>} : memref<8x128xf32, #tpu.memory_space<vmem>>, vector<8x128xf32>,
    return
  }
}

</mosaic_0001>

<llo_original>
// kernel: actor_critic_apply.1
$region0: #{actor_critic_apply.1}
  #allocation0 [shape = 'u32[]', space=smem, size = 0x4, offset = 0x4, fixed_abs, tag = 'smem constant byte address 0x4 - core index']
  #allocation1 [shape = 'u32[144,128]{1,0:T(1,128)}', space=vmem, size = 0x12000, scoped, tag = 'internal scratch']
  %s0 = inlined_call_operand.vmem [shape: f32[8,4], index: 0, kind: input, shape index: {}]
  %s1 = inlined_call_operand.hbm [shape: f32[136,128], index: 1, kind: input, shape index: {}]
  %s2 = inlined_call_operand.vmem [shape: f32[8,128], index: 2, kind: output, shape index: {}]
  %s3 = sld [smem:[#allocation0]]
  $region22: #{actor_critic_apply.1} parent=0
    _
  %s5 = ssub.s32 1, %s3
  %s6 = scalar_select 0, %s5, %s3
  $region1: #{actor_critic_apply.1} parent=0
    #allocation2 [shape = 'u8[69632]{0}', space=vmem, size = 0x11000, scoped, tag = 'input window, operand 1, single buffered']
    #allocation3 [shape = 's32[1]{0}', space=sflag, size = 0x4, scoped, tag = 'scoped memory for actor_critic_apply.1']
    %7 = vsyncpa [#allocation3], 0
    // Predicated region
    $region2: #{actor_critic_apply.1} parent=1 // pred_check
      _
    $region3: #{actor_critic_apply.1} parent=1 // pred_check_branch
      %9 = sbr.rel (0) target = $region5
    $region4: #{actor_critic_apply.1} parent=1 // pred_region
      _
    $region5: #{actor_critic_apply.1} parent=1 // pred_fallthru
      _
    // Predicated region
    $region6: #{actor_critic_apply.1} parent=1 // pred_check
      _
    $region7: #{actor_critic_apply.1} parent=1 // pred_check_branch
      %11 = sbr.rel (0) target = $region9
    $region8: #{actor_critic_apply.1} parent=1 // pred_region
      %s13 = ssub.s32 2176, 2176
      %14 = vsyncadd [#allocation3], %s13
      %s15 = sshll.u32 [#allocation2], 4
      %s16 = int_to_ptr.vmem [resolvable:$true] %s15
      %21 = dma.hbm_to_vmem [thread:$0]  %s1, 2176, %s16, [#allocation3], 128, 128, 8
    $region9: #{actor_critic_apply.1} parent=1 // pred_fallthru
      _
    // Predicated region
    $region10: #{actor_critic_apply.1} parent=1 // pred_check
      _
    $region11: #{actor_critic_apply.1} parent=1 // pred_check_branch
      %23 = sbr.rel (0) target = $region13
    $region12: #{actor_critic_apply.1} parent=1 // pred_region
      %24 = dma.done [#allocation3], 2176
    $region13: #{actor_critic_apply.1} parent=1 // pred_fallthru
      _
    %v25 = vld [vmem:[%s0] sm:$0xff]
    %v26 = vld [vmem:[#allocation2] sm:$0x1]
    %28 = vset.pattern.permute.xlu0 0
    %29 = vperm.xlu0 %28, %v25
    %v30 = vpop.permute.xlu0 %29
    %v32 = vlaneseq
    %v33 = vshrl.u32 %v32, 7
    %v34 = vsub.s32 0, %v33
    %v35 = vrot.slane %v26, %v34
    %v36 = vmul.f32 %v30, %v35
    %v37 = vld [vmem:[#allocation2 + $0x1] sm:$0x1]
    %38 = vset.pattern.permute.xlu0 1
    %39 = vperm.xlu0 %38, %v25
    %v40 = vpop.permute.xlu0 %39
    %v42 = vlaneseq
    %v43 = vshrl.u32 %v42, 7
    %v44 = vsub.s32 0, %v43
    %v45 = vrot.slane %v37, %v44
    %v46 = vmul.f32 %v40, %v45
    %v47 = vadd.f32 %v36, %v46
    %v48 = vld [vmem:[#allocation2 + $0x2] sm:$0x1]
    %49 = vset.pattern.permute.xlu0 2
    %50 = vperm.xlu0 %49, %v25
    %v51 = vpop.permute.xlu0 %50
    %v53 = vlaneseq
    %v54 = vshrl.u32 %v53, 7
    %v55 = vsub.s32 0, %v54
    %v56 = vrot.slane %v48, %v55
    %v57 = vmul.f32 %v51, %v56
    %v58 = vadd.f32 %v47, %v57
    %v59 = vld [vmem:[#allocation2 + $0x3] sm:$0x1]
    %60 = vset.pattern.permute.xlu0 3
    %61 = vperm.xlu0 %60, %v25
    %v62 = vpop.permute.xlu0 %61
    %v64 = vlaneseq
    %v65 = vshrl.u32 %v64, 7
    %v66 = vsub.s32 0, %v65
    %v67 = vrot.slane %v59, %v66
    %v68 = vmul.f32 %v62, %v67
    %v69 = vadd.f32 %v58, %v68
    %v70 = vld [vmem:[#allocation2 + $0x4] sm:$0x1]
    %v71 = vlaneseq
    %v72 = vshrl.u32 %v71, 7
    %v73 = vsub.s32 0, %v72
    %v74 = vrot.slane %v70, %v73
    %v75 = vadd.f32 %v69, %v74
    %v76 = vmax.f32 %v75, 0.0
    %v77 = vld [vmem:[#allocation2 + $0x8] sm:$0xff]
    %v78 = vld [vmem:[#allocation2 + $0x10] sm:$0xff]
    %v79 = vld [vmem:[#allocation2 + $0x18] sm:$0xff]
    %v80 = vld [vmem:[#allocation2 + $0x20] sm:$0xff]
    %v81 = vld [vmem:[#allocation2 + $0x28] sm:$0xff]
    %v82 = vld [vmem:[#allocation2 + $0x30] sm:$0xff]
    %v83 = vld [vmem:[#allocation2 + $0x38] sm:$0xff]
    %v84 = vld [vmem:[#allocation2 + $0x40] sm:$0xff]
    %v85 = vld [vmem:[#allocation2 + $0x48] sm:$0xff]
    %v86 = vld [vmem:[#allocation2 + $0x50] sm:$0xff]
    %v87 = vld [vmem:[#allocation2 + $0x58] sm:$0xff]
    %v88 = vld [vmem:[#allocation2 + $0x60] sm:$0xff]
    %v89 = vld [vmem:[#allocation2 + $0x68] sm:$0xff]
    %v90 = vld [vmem:[#allocation2 + $0x70] sm:$0xff]
    %v91 = vld [vmem:[#allocation2 + $0x78] sm:$0xff]
    %v92 = vld [vmem:[#allocation2 + $0x80] sm:$0xff]
    %v93 = vld [vmem:[#allocation2 + $0x5] sm:$0x1]
    %v94 = vlaneseq
    %v95 = vshrl.u32 %v94, 7
    %v96 = vsub.s32 0, %v95
    %v97 = vrot.slane %v93, %v96
    %98 = vmatprep.subr.mxu0 0.0
    %99 = vmatpush1.msra.mxu0 %v77
    %100 = vmatprep.subr.mxu0 0.0
    %101 = vmatpush1.msra.mxu0 %v78
    %102 = vmatprep.subr.mxu0 0.0
    %103 = vmatpush1.msra.mxu0 %v79
    %104 = vmatprep.subr.mxu0 0.0
    %105 = vmatpush1.msra.mxu0 %v80
    %106 = vmatprep.subr.mxu0 0.0
    %107 = vmatpush1.msra.mxu0 %v81
    %108 = vmatprep.subr.mxu0 0.0
    %109 = vmatpush1.msra.mxu0 %v82
    %110 = vmatprep.subr.mxu0 0.0
    %111 = vmatpush1.msra.mxu0 %v83
    %112 = vmatprep.subr.mxu0 0.0
    %113 = vmatpush1.msra.mxu0 %v84
    %114 = vmatprep.subr.mxu0 0.0
    %115 = vmatpush1.msra.mxu0 %v85
    %116 = vmatprep.subr.mxu0 0.0
    %117 = vmatpush1.msra.mxu0 %v86
    %118 = vmatprep.subr.mxu0 0.0
    %119 = vmatpush1.msra.mxu0 %v87
    %120 = vmatprep.subr.mxu0 0.0
    %121 = vmatpush1.msra.mxu0 %v88
    %122 = vmatprep.subr.mxu0 0.0
    %123 = vmatpush1.msra.mxu0 %v89
    %124 = vmatprep.subr.mxu0 0.0
    %125 = vmatpush1.msra.mxu0 %v90
    %126 = vmatprep.subr.mxu0 0.0
    %127 = vmatpush1.msra.mxu0 %v91
    %128 = vmatprep.subr.mxu0 0.0
    %129 = vmatpush1.msra.mxu0 %v92
    %130 = vmatprep.subr.mxu0 0.0
    %131 = vmatpush1.msra.mxu0 0.0
    %132 = vmatprep.subr.mxu0 0.0
    %133 = vmatpush1.msra.mxu0 0.0
    %134 = vmatprep.subr.mxu0 0.0
    %135 = vmatpush1.msra.mxu0 0.0
    %136 = vmatprep.subr.mxu0 0.0
    %137 = vmatpush1.msra.mxu0 0.0
    %138 = vmatprep.subr.mxu0 0.0
    %139 = vmatpush1.msra.mxu0 0.0
    %140 = vmatprep.subr.mxu0 0.0
    %141 = vmatpush1.msra.mxu0 0.0
    %142 = vmatprep.subr.mxu0 0.0
    %143 = vmatpush1.msra.mxu0 0.0
    %144 = vmatprep.subr.mxu0 0.0
    %145 = vmatpush1.msra.mxu0 0.0
    %146 = vmatprep.subr.mxu0 0.0
    %147 = vmatpush1.msra.mxu0 0.0
    %148 = vmatprep.subr.mxu0 0.0
    %149 = vmatpush1.msra.mxu0 0.0
    %150 = vmatprep.subr.mxu0 0.0
    %151 = vmatpush1.msra.mxu0 0.0
    %152 = vmatprep.subr.mxu0 0.0
    %153 = vmatpush1.msra.mxu0 0.0
    %154 = vmatprep.subr.mxu0 0.0
    %155 = vmatpush1.msra.mxu0 0.0
    %156 = vmatprep.subr.mxu0 0.0
    %157 = vmatpush1.msra.mxu0 0.0
    %158 = vmatprep.subr.mxu0 0.0
    %159 = vmatpush1.msra.mxu0 0.0
    %160 = vmatprep.subr.mxu0 0.0
    %161 = vmatpush1.msra.mxu0 0.0
    %162 = vmatprep.mubr.f32.mxu0 0.0
    %163 = vmatmul.mubr.f32.gmra.mrb[0].mxu0 %v76
    %v164 = vpop.f32.mrb[0].mxu0
    %v165 = vadd.f32 %v97, %v164
    %v166 = vpop.f32.mrb[0].mxu0
    %167 = vdwg.mxu0
    %v168 = vrot.slane %v165, 4
    %v169 = vmax.f32 %v165, %v168
    %v170 = vrot.slane %v169, 2
    %v171 = vmax.f32 %v169, %v170
    %v172 = vrot.slane %v171, 1
    %v173 = vmax.f32 %v171, %v172
    %v174 = vsub.f32 %v165, %v173
    %v175 = vmul.f32 %v174, 1.442695
    %v176 = vpow.pop %v175
    %v177 = vrot.slane %v176, 4
    %v178 = vadd.f32 %v176, %v177
    %v179 = vrot.slane %v178, 2
    %v180 = vadd.f32 %v178, %v179
    %v181 = vrot.slane %v180, 1
    %v182 = vadd.f32 %v180, %v181
    %v183 = vrcp.pop %v182
    %v184 = vmul.f32 %v182, %v183
    %v185 = vsub.f32 2.0, %v184
    %v186 = vmul.f32 %v183, %v185
    %v187 = vmul.f32 %v176, %v186
    %v188 = vlaneseq
    %v189 = vand.u32 %v188, 127
    %vm190 = vcmp.lt.s32.totalorder %v189, 2
    %v191 = vsel %vm190, %v187, %v165
    %192 = vst [vmem:[%s2] sm:$0xff] %v191
    // Predicated region
    $region14: #{actor_critic_apply.1} parent=1 // pred_check
      _
    $region15: #{actor_critic_apply.1} parent=1 // pred_check_branch
      %194 = sbr.rel (0) target = $region17
    $region16: #{actor_critic_apply.1} parent=1 // pred_region
      _
    $region17: #{actor_critic_apply.1} parent=1 // pred_fallthru
      _
    // Predicated region
    $region18: #{actor_critic_apply.1} parent=1 // pred_check
      _
    $region19: #{actor_critic_apply.1} parent=1 // pred_check_branch
      %196 = sbr.rel (0) target = $region21
    $region20: #{actor_critic_apply.1} parent=1 // pred_region
      _
    $region21: #{actor_critic_apply.1} parent=1 // pred_fallthru
      _
    %197 = vsyncpa [#allocation3], 1

</llo_original>
